<compile_context>
chip_gen: v7x
topology: tpu7x:2x2x1
jax: 0.10.0
libtpu: 0.0.40
codegen_flags: <defaults>
</compile_context>

<pallas_src>
from functools import partial

import numpy as np
import jax
import jax.numpy as jnp
from jax.experimental import pallas as pl
from jax.experimental.pallas import tpu as pltpu


def attention_kernel(x_ref, w_ref, wq_ref, o_ref, *, split, input_dim, neg_slope):
    # x_ref: (TB, split*D)   w_ref, wq_ref: (D, D)   o_ref: (TB, D)
    D = input_dim
    w = w_ref[...]                                   # fused all-head projection
    wq = wq_ref[...]                                 # folded query weights

    xa = []      # per-split all-head projections, (TB, D) f32
    logit = []   # per-split logits, replicated across each head's P lanes
    for s in range(split):
        x_s = x_ref[:, s * D:(s + 1) * D]            # (TB, D) static lane slice
        xa.append(jnp.dot(x_s, w, preferred_element_type=jnp.float32))
        l_s = jnp.dot(x_s, wq, preferred_element_type=jnp.float32)
        logit.append(jnp.where(l_s > 0, l_s, neg_slope * l_s))   # LeakyReLU(0.2)

    # Numerically-stable softmax over the split axis with deferred
    # normalization: plain VPU slab ops, no (TB, split, D) `att` intermediate.
    m = logit[0]
    for s in range(1, split):
        m = jnp.maximum(m, logit[s])
    num = jnp.zeros_like(xa[0])
    den = jnp.zeros_like(m)
    for s in range(split):
        e_s = jnp.exp(logit[s] - m)
        num = num + e_s * xa[s]
        den = den + e_s

    inv = pl.reciprocal(den, approx=True)            # EUP slot (essentially free)
    inv = inv * (2.0 - den * inv)                    # one Newton step -> ~f32 accuracy
    o_ref[...] = (num * inv).astype(o_ref.dtype)


def _vmem_capacity_bytes():
    """Physical VMEM per TensorCore; conservative (v7x) fallback otherwise."""
    try:
        cap = int(pltpu.get_tpu_info().vmem_capacity_bytes)
        if cap > 0:
            return cap
    except Exception:
        pass
    return 64 << 20


def _choose_tiling(B, split, D, x_itemsize, w_itemsize):
    cap = _vmem_capacity_bytes()
    budget = (3 * cap) // 4                          # ~25% headroom for compiler temps

    # Packed weights (W_fused + WQ) are VMEM residents; single-buffer them when
    # double-buffering a constant-index operand would burn >8 MiB of dead VMEM.
    weight_buf = 2 * D * D * w_itemsize
    single_buffer_w = weight_buf > (8 << 20)
    weight_bytes = weight_buf * (1 if single_buffer_w else 2)

    # Per-batch-row VMEM: double-buffered x tile + double-buffered out tile +
    # ~(2*split + 4) live f32 (TB, D) intermediates (xa_s, e_s, m, num, den).
    row_bytes = 2 * split * D * x_itemsize + 2 * D * 4 + (2 * split + 4) * D * 4
    avail = budget - weight_bytes - (4 << 20)        # fixed slack for Mosaic internals
    tb = max(8, avail // max(row_bytes, 1))
    tb = int(min(tb, 16384))

    if tb >= B:
        if B >= 16:
            # Keep >=2 grid steps so v7x can shard the batch across both TCs.
            tb = min(B, ((B + 1) // 2 + 7) // 8 * 8)
        else:
            tb = B                                   # full extent: always a legal block
    else:
        tb = (tb // 8) * 8                           # multiple of 8 when actually tiling

    vmem_limit = int(min(max(budget, 32 << 20), 100 << 20))
    return tb, vmem_limit, single_buffer_w


def attention_module(x, W, q, *, split, compute_dtype=jnp.float32):
    """x: (B, split*input_dim) (or anything with B*split*input_dim elements)."""
    B = x.shape[0]
    H, D, P = W.shape
    assert H * P == D, "input_dim must be divisible by num_heads"

    # TODO(synk): torch `x.resize(B, split, input_dim)` is treated as a contiguous
    # reshape here; a non-contiguous torch layout would not match.
    x2 = jnp.reshape(x, (B, split * D)).astype(compute_dtype)

    # --- static parameter packing (tiny, done once per call, in f32) --------
    Wf = jnp.asarray(W, jnp.float32)
    qf = jnp.asarray(q, jnp.float32)[:, 0, :]                        # (H, P)
    w_fused = jnp.transpose(Wf, (1, 0, 2)).reshape(D, H * P)         # (D, D)
    # WQ[d, h*P + r] = (W[h] @ q[h])[d]  -> query folded into the weights.
    wq = jnp.repeat(jnp.einsum("hdp,hp->dh", Wf, qf), P, axis=1)     # (D, D)
    w_fused = w_fused.astype(compute_dtype)
    wq = wq.astype(compute_dtype)

    itemsize = int(np.dtype(compute_dtype).itemsize)
    TB, vmem_limit, single_buffer_w = _choose_tiling(B, split, D, itemsize, itemsize)
    grid = (pl.cdiv(B, TB),)

    def weight_spec():
        if single_buffer_w:
            # Large resident weights: don't waste VMEM double-buffering them.
            return pl.BlockSpec((D, D), lambda i: (0, 0),
                                pipeline_mode=pl.Buffered(1))
        return pl.BlockSpec((D, D), lambda i: (0, 0))

    kernel = partial(attention_kernel, split=split, input_dim=D, neg_slope=0.2)
    return pl.pallas_call(
        kernel,
        out_shape=jax.ShapeDtypeStruct((B, D), jnp.float32),
        grid=grid,
        in_specs=[
            pl.BlockSpec((TB, split * D), lambda i: (i, 0)),   # x slab (batch on sublanes)
            weight_spec(),                                     # W_fused
            weight_spec(),                                     # WQ
        ],
        out_specs=pl.BlockSpec((TB, D), lambda i: (i, 0)),
        compiler_params=pltpu.CompilerParams(
            dimension_semantics=("parallel",),                 # v7x dual-TC sharding
            vmem_limit_bytes=vmem_limit,
        ),
    )(x2, w_fused, wq)


def init_params(key, input_dim, num_heads):
    """Deterministic synthetic init matching the torch __init__ shapes/schemes."""
    per_dim = input_dim // num_heads
    kw, kq = jax.random.split(key)
    # Linear(input_dim, per_dim, bias=False), glorot/xavier-uniform.
    bw = (6.0 / (input_dim + per_dim)) ** 0.5
    W = jax.random.uniform(kw, (num_heads, input_dim, per_dim), jnp.float32, -bw, bw)
    # q: (per_dim, 1) with xavier_uniform(gain=1.414); stored as (H, 1, P).
    bq = 1.414 * (6.0 / (per_dim + 1)) ** 0.5
    q = jax.random.uniform(kq, (num_heads, 1, per_dim), jnp.float32, -bq, bq)
    return W, q


def ref_forward(x, W, q, *, split):
    """Pure-JAX reference mirroring the torch forward exactly."""
    B = x.shape[0]
    H, D, P = W.shape
    x3 = jnp.reshape(x, (B, split, D)).astype(jnp.float32)
    outs = []
    for h in range(H):
        x_h = x3 @ W[h]                                   # (B, S, P)
        s = x_h @ q[h].reshape(P, 1)                      # (B, S, 1)
        s = jnp.where(s > 0, s, 0.2 * s)                  # LeakyReLU(0.2)
        att = jax.nn.softmax(s, axis=1)                   # softmax over split
        outs.append(jnp.sum(x_h * att, axis=1))           # (B, P)
    return jnp.concatenate(outs, axis=1)                  # (B, D)


if __name__ == "__main__":
    input_dim = 32
    num_heads = 4
    split = 2
    batch = 2

    key = jax.random.PRNGKey(0)
    kx, kp = jax.random.split(key)
    x = jax.random.normal(kx, (batch, split * input_dim), dtype=jnp.float32)
    W, q = init_params(kp, input_dim, num_heads)

    out = jax.block_until_ready(attention_module(x, W, q, split=split))
    ref = ref_forward(x, W, q, split=split)
    assert out.shape == (batch, input_dim)
    # Tolerance covers the implementation-defined f32 matmul precision on the
    # TPU MXU (full f32 vs bf16 passes) on either side of the comparison and
    # the (refined) EUP reciprocal.
    assert jnp.allclose(out, ref, atol=3e-2, rtol=2e-2), "f32 kernel mismatch vs reference"

    # bf16 fast path: halves the dominant x HBM stream (f32 accumulation kept);
    # looser tolerance expected per the review.
    out_bf16 = jax.block_until_ready(
        attention_module(x, W, q, split=split, compute_dtype=jnp.bfloat16))
    assert jnp.allclose(out_bf16, ref, atol=1e-1, rtol=5e-2), "bf16 kernel mismatch vs reference"

    print("KERNEL_OK")
</pallas_src>

<mosaic_0001>
module attributes {stable_mosaic.version = 11 : i64} {
  func.func @attention_kernel(%arg0: i32, %arg1: memref<2x64xf32, #tpu.memory_space<vmem>>, %arg2: memref<32x32xf32, #tpu.memory_space<vmem>>, %arg3: memref<32x32xf32, #tpu.memory_space<vmem>>, %arg4: memref<2x32xf32, #tpu.memory_space<vmem>>) attributes {dimension_semantics = [#tpu.dimension_semantics<parallel>], iteration_bounds = array<i64: 1>, scalar_prefetch = 0 : i64, scratch_operands = 0 : i64, tpu.core_type = #tpu.core_type<tc>, window_params = [{transform_indices = @transform_0, window_bounds = array<i64: 2, 64>}, {pipeline_mode = #tpu.pipeline_mode<synchronous>, transform_indices = @transform_1, window_bounds = array<i64: 32, 32>}, {pipeline_mode = #tpu.pipeline_mode<synchronous>, transform_indices = @transform_2, window_bounds = array<i64: 32, 32>}, {transform_indices = @transform_3, window_bounds = array<i64: 2, 32>}]} {
    %c0 = arith.constant 0 : index
    %c0_0 = arith.constant 0 : index
    %0 = vector.load %arg2[%c0, %c0_0] : memref<32x32xf32, #tpu.memory_space<vmem>>, vector<32x32xf32>
    %c0_1 = arith.constant 0 : index
    %c0_2 = arith.constant 0 : index
    %1 = vector.load %arg3[%c0_1, %c0_2] : memref<32x32xf32, #tpu.memory_space<vmem>>, vector<32x32xf32>
    %c0_3 = arith.constant 0 : index
    %c0_4 = arith.constant 0 : index
    %2 = vector.load %arg1[%c0_3, %c0_4] : memref<2x64xf32, #tpu.memory_space<vmem>>, vector<2x32xf32>
    %cst = arith.constant dense<0.000000e+00> : vector<2x32xf32>
    %3 = tpu.matmul %2, %0, %cst {dimension_numbers = #tpu.dot_dimension_numbers<[1], [0], [0], [1], [0, 0, 1, 1], [], []>} : vector<2x32xf32>, vector<32x32xf32>, vector<2x32xf32> -> vector<2x32xf32>
    %cst_5 = arith.constant dense<0.000000e+00> : vector<2x32xf32>
    %4 = tpu.matmul %2, %1, %cst_5 {dimension_numbers = #tpu.dot_dimension_numbers<[1], [0], [0], [1], [0, 0, 1, 1], [], []>} : vector<2x32xf32>, vector<32x32xf32>, vector<2x32xf32> -> vector<2x32xf32>
    %cst_6 = arith.constant 0.000000e+00 : f32
    %5 = vector.broadcast %cst_6 : f32 to vector<2x32xf32>
    %6 = arith.cmpf ogt, %4, %5 : vector<2x32xf32>
    %cst_7 = arith.constant 2.000000e-01 : f32
    %7 = vector.broadcast %cst_7 : f32 to vector<2x32xf32>
    %8 = arith.mulf %7, %4 : vector<2x32xf32>
    %9 = arith.select %6, %4, %8 : vector<2x32xi1>, vector<2x32xf32>
    %c0_8 = arith.constant 0 : index
    %c32 = arith.constant 32 : index
    %10 = vector.load %arg1[%c0_8, %c32] : memref<2x64xf32, #tpu.memory_space<vmem>>, vector<2x32xf32>
    %cst_9 = arith.constant dense<0.000000e+00> : vector<2x32xf32>
    %11 = tpu.matmul %10, %0, %cst_9 {dimension_numbers = #tpu.dot_dimension_numbers<[1], [0], [0], [1], [0, 0, 1, 1], [], []>} : vector<2x32xf32>, vector<32x32xf32>, vector<2x32xf32> -> vector<2x32xf32>
    %cst_10 = arith.constant dense<0.000000e+00> : vector<2x32xf32>
    %12 = tpu.matmul %10, %1, %cst_10 {dimension_numbers = #tpu.dot_dimension_numbers<[1], [0], [0], [1], [0, 0, 1, 1], [], []>} : vector<2x32xf32>, vector<32x32xf32>, vector<2x32xf32> -> vector<2x32xf32>
    %cst_11 = arith.constant 0.000000e+00 : f32
    %13 = vector.broadcast %cst_11 : f32 to vector<2x32xf32>
    %14 = arith.cmpf ogt, %12, %13 : vector<2x32xf32>
    %cst_12 = arith.constant 2.000000e-01 : f32
    %15 = vector.broadcast %cst_12 : f32 to vector<2x32xf32>
    %16 = arith.mulf %15, %12 : vector<2x32xf32>
    %17 = arith.select %14, %12, %16 : vector<2x32xi1>, vector<2x32xf32>
    %18 = arith.maximumf %9, %17 : vector<2x32xf32>
    %cst_13 = arith.constant 0.000000e+00 : f32
    %19 = vector.broadcast %cst_13 : f32 to vector<2x32xf32>
    %cst_14 = arith.constant 0.000000e+00 : f32
    %20 = vector.broadcast %cst_14 : f32 to vector<2x32xf32>
    %21 = arith.subf %9, %18 : vector<2x32xf32>
    %22 = math.exp %21 : vector<2x32xf32>
    %23 = arith.mulf %22, %3 : vector<2x32xf32>
    %24 = arith.addf %19, %23 : vector<2x32xf32>
    %25 = arith.addf %20, %22 : vector<2x32xf32>
    %26 = arith.subf %17, %18 : vector<2x32xf32>
    %27 = math.exp %26 : vector<2x32xf32>
    %28 = arith.mulf %27, %11 : vector<2x32xf32>
    %29 = arith.addf %24, %28 : vector<2x32xf32>
    %30 = arith.addf %25, %27 : vector<2x32xf32>
    %31 = tpu.reciprocal %30 {approx = true} : vector<2x32xf32> -> vector<2x32xf32>
    %32 = arith.mulf %30, %31 : vector<2x32xf32>
    %cst_15 = arith.constant 2.000000e+00 : f32
    %33 = vector.broadcast %cst_15 : f32 to vector<2x32xf32>
    %34 = arith.subf %33, %32 : vector<2x32xf32>
    %35 = arith.mulf %31, %34 : vector<2x32xf32>
    %36 = arith.mulf %29, %35 : vector<2x32xf32>
    %c0_16 = arith.constant 0 : index
    %c0_17 = arith.constant 0 : index
    %37 = vector.load %arg4[%c0_16, %c0_17] : memref<2x32xf32, #tpu.memory_space<vmem>>, vector<2x32xf32>
    tpu.vector_store %arg4[%c0_16, %c0_17], %36 {strides = array<i32>} : memref<2x32xf32, #tpu.memory_space<vmem>>, vector<2x32xf32>,
    return
  }
  func.func @transform_0(%arg0: i32) -> (i32, i32) {
    %c0_i32 = arith.constant 0 : i32
    %c0_i32_0 = arith.constant 0 : i32
    return %arg0, %c0_i32 : i32, i32
  }
  func.func @transform_1(%arg0: i32) -> (i32, i32) {
    %c0_i32 = arith.constant 0 : i32
    %c0_i32_0 = arith.constant 0 : i32
    %c0_i32_1 = arith.constant 0 : i32
    return %c0_i32, %c0_i32_0 : i32, i32
  }
  func.func @transform_2(%arg0: i32) -> (i32, i32) {
    %c0_i32 = arith.constant 0 : i32
    %c0_i32_0 = arith.constant 0 : i32
    %c0_i32_1 = arith.constant 0 : i32
    return %c0_i32, %c0_i32_0 : i32, i32
  }
  func.func @transform_3(%arg0: i32) -> (i32, i32) {
    %c0_i32 = arith.constant 0 : i32
    %c0_i32_0 = arith.constant 0 : i32
    return %arg0, %c0_i32 : i32, i32
  }
}

</mosaic_0001>

<llo_original>
// kernel: tpu_custom_call.1
$region0: #{tpu_custom_call.1}
  #allocation0 [shape = 'u32[]', space=smem, size = 0x4, offset = 0x4, fixed_abs, tag = 'smem constant byte address 0x4 - core index']
  #allocation1 [shape = 'u32[144,128]{1,0:T(1,128)}', space=vmem, size = 0x12000, scoped, tag = 'internal scratch']
  %s0 = inlined_call_operand.hbm [shape: f32[2,64], index: 0, kind: input, shape index: {}]
  %s1 = inlined_call_operand.hbm [shape: f32[32,32], index: 1, kind: input, shape index: {}]
  %s2 = inlined_call_operand.hbm [shape: f32[32,32], index: 2, kind: input, shape index: {}]
  %s3 = inlined_call_operand.hbm [shape: f32[2,32], index: 3, kind: output, shape index: {}]
  %s4 = sld [smem:[#allocation0]]
  $region34: #{tpu_custom_call.1} parent=0
    _
  %s6 = ssub.s32 1, %s4
  %s7 = scalar_select 0, %s6, %s4
  $region1: #{tpu_custom_call.1} parent=0
    #allocation2 [shape = 'u8[1024]{0}', space=vmem, size = 0x400, scoped, tag = 'input window, operand 0, single buffered']
    #allocation3 [shape = 's32[1]{0}', space=sflag, size = 0x4, scoped, tag = 'scoped memory for tpu_custom_call.1']
    #allocation4 [shape = 's32[1]{0}', space=sflag, size = 0x4, scoped, tag = 'scoped memory for tpu_custom_call.1']
    #allocation5 [shape = 'u8[16384]{0}', space=vmem, size = 0x4000, scoped, tag = 'input window, operand 1, single buffered']
    #allocation6 [shape = 's32[1]{0}', space=sflag, size = 0x4, scoped, tag = 'scoped memory for tpu_custom_call.1']
    #allocation7 [shape = 'u8[16384]{0}', space=vmem, size = 0x4000, scoped, tag = 'input window, operand 2, single buffered']
    #allocation8 [shape = 'u8[1024]{0}', space=vmem, size = 0x400, scoped, tag = 'output window, operand 0, single buffered']
    %8 = vsyncpa [#allocation3], 0
    %9 = vsyncpa [#allocation6], 0
    %10 = vsyncpa [#allocation4], 0
    // Predicated region
    $region2: #{tpu_custom_call.1} parent=1 // pred_check
      _
    $region3: #{tpu_custom_call.1} parent=1 // pred_check_branch
      %12 = sbr.rel (0) target = $region5
    $region4: #{tpu_custom_call.1} parent=1 // pred_region
      %s14 = ssub.s32 32, 32
      %15 = vsyncadd [#allocation3], %s14
      %s17 = sshll.u32 [#allocation2], 4
      %s18 = int_to_ptr.vmem [resolvable:$true] %s17
      %20 = dma.hbm_to_vmem [thread:$0]  %s0, 32, %s18, [#allocation3]
    $region5: #{tpu_custom_call.1} parent=1 // pred_fallthru
      _
    // Predicated region
    $region6: #{tpu_custom_call.1} parent=1 // pred_check
      _
    $region7: #{tpu_custom_call.1} parent=1 // pred_check_branch
      %22 = sbr.rel (0) target = $region9
    $region8: #{tpu_custom_call.1} parent=1 // pred_region
      %s24 = ssub.s32 512, 512
      %25 = vsyncadd [#allocation6], %s24
      %s26 = sshll.u32 [#allocation5], 4
      %s27 = int_to_ptr.vmem [resolvable:$true] %s26
      %32 = dma.hbm_to_vmem [thread:$0]  %s1, 512, %s27, [#allocation6], 128, 128, 8
    $region9: #{tpu_custom_call.1} parent=1 // pred_fallthru
      _
    // Predicated region
    $region10: #{tpu_custom_call.1} parent=1 // pred_check
      _
    $region11: #{tpu_custom_call.1} parent=1 // pred_check_branch
      %34 = sbr.rel (0) target = $region13
    $region12: #{tpu_custom_call.1} parent=1 // pred_region
      %s36 = ssub.s32 512, 512
      %37 = vsyncadd [#allocation6], %s36
      %s38 = sshll.u32 [#allocation7], 4
      %s39 = int_to_ptr.vmem [resolvable:$true] %s38
      %44 = dma.hbm_to_vmem [thread:$0]  %s2, 512, %s39, [#allocation6], 128, 128, 8
    $region13: #{tpu_custom_call.1} parent=1 // pred_fallthru
      _
    // Predicated region
    $region14: #{tpu_custom_call.1} parent=1 // pred_check
      _
    $region15: #{tpu_custom_call.1} parent=1 // pred_check_branch
      %46 = sbr.rel (0) target = $region17
    $region16: #{tpu_custom_call.1} parent=1 // pred_region
      %47 = dma.done [#allocation3], 32
    $region17: #{tpu_custom_call.1} parent=1 // pred_fallthru
      _
    // Predicated region
    $region18: #{tpu_custom_call.1} parent=1 // pred_check
      _
    $region19: #{tpu_custom_call.1} parent=1 // pred_check_branch
      %49 = sbr.rel (0) target = $region21
    $region20: #{tpu_custom_call.1} parent=1 // pred_region
      %50 = dma.done [#allocation6], 512
    $region21: #{tpu_custom_call.1} parent=1 // pred_fallthru
      _
    // Predicated region
    $region22: #{tpu_custom_call.1} parent=1 // pred_check
      _
    $region23: #{tpu_custom_call.1} parent=1 // pred_check_branch
      %52 = sbr.rel (0) target = $region25
    $region24: #{tpu_custom_call.1} parent=1 // pred_region
      %53 = dma.done [#allocation6], 512
    $region25: #{tpu_custom_call.1} parent=1 // pred_fallthru
      _
    %v54 = vld [vmem:[#allocation5] sm:$0xff]
    %v55 = vld [vmem:[#allocation5 + $0x8] sm:$0xff]
    %v56 = vld [vmem:[#allocation5 + $0x10] sm:$0xff]
    %v57 = vld [vmem:[#allocation5 + $0x18] sm:$0xff]
    %v58 = vld [vmem:[#allocation7] sm:$0xff]
    %v59 = vld [vmem:[#allocation7 + $0x8] sm:$0xff]
    %v60 = vld [vmem:[#allocation7 + $0x10] sm:$0xff]
    %v61 = vld [vmem:[#allocation7 + $0x18] sm:$0xff]
    %v62 = vld [vmem:[#allocation2] sm:$0x3]
    %vm63 = vcmask 261120
    %v65 = vsel %vm63, %v62, 0
    %67 = vmatprep.subr.mxu0 0.0
    %68 = vmatpush1.msra.mxu0 %v54
    %69 = vmatprep.subr.mxu0 0.0
    %70 = vmatpush1.msra.mxu0 %v55
    %71 = vmatprep.subr.mxu0 0.0
    %72 = vmatpush1.msra.mxu0 %v56
    %73 = vmatprep.subr.mxu0 0.0
    %74 = vmatpush1.msra.mxu0 %v57
    %75 = vmatprep.subr.mxu0 0.0
    %76 = vmatpush1.msra.mxu0 0.0
    %77 = vmatprep.subr.mxu0 0.0
    %78 = vmatpush1.msra.mxu0 0.0
    %79 = vmatprep.subr.mxu0 0.0
    %80 = vmatpush1.msra.mxu0 0.0
    %81 = vmatprep.subr.mxu0 0.0
    %82 = vmatpush1.msra.mxu0 0.0
    %83 = vmatprep.subr.mxu0 0.0
    %84 = vmatpush1.msra.mxu0 0.0
    %85 = vmatprep.subr.mxu0 0.0
    %86 = vmatpush1.msra.mxu0 0.0
    %87 = vmatprep.subr.mxu0 0.0
    %88 = vmatpush1.msra.mxu0 0.0
    %89 = vmatprep.subr.mxu0 0.0
    %90 = vmatpush1.msra.mxu0 0.0
    %91 = vmatprep.subr.mxu0 0.0
    %92 = vmatpush1.msra.mxu0 0.0
    %93 = vmatprep.subr.mxu0 0.0
    %94 = vmatpush1.msra.mxu0 0.0
    %95 = vmatprep.subr.mxu0 0.0
    %96 = vmatpush1.msra.mxu0 0.0
    %97 = vmatprep.subr.mxu0 0.0
    %98 = vmatpush1.msra.mxu0 0.0
    %99 = vmatprep.subr.mxu0 0.0
    %100 = vmatpush1.msra.mxu0 0.0
    %101 = vmatprep.subr.mxu0 0.0
    %102 = vmatpush1.msra.mxu0 0.0
    %103 = vmatprep.subr.mxu0 0.0
    %104 = vmatpush1.msra.mxu0 0.0
    %105 = vmatprep.subr.mxu0 0.0
    %106 = vmatpush1.msra.mxu0 0.0
    %107 = vmatprep.subr.mxu0 0.0
    %108 = vmatpush1.msra.mxu0 0.0
    %109 = vmatprep.subr.mxu0 0.0
    %110 = vmatpush1.msra.mxu0 0.0
    %111 = vmatprep.subr.mxu0 0.0
    %112 = vmatpush1.msra.mxu0 0.0
    %113 = vmatprep.subr.mxu0 0.0
    %114 = vmatpush1.msra.mxu0 0.0
    %115 = vmatprep.subr.mxu0 0.0
    %116 = vmatpush1.msra.mxu0 0.0
    %117 = vmatprep.subr.mxu0 0.0
    %118 = vmatpush1.msra.mxu0 0.0
    %119 = vmatprep.subr.mxu0 0.0
    %120 = vmatpush1.msra.mxu0 0.0
    %121 = vmatprep.subr.mxu0 0.0
    %122 = vmatpush1.msra.mxu0 0.0
    %123 = vmatprep.subr.mxu0 0.0
    %124 = vmatpush1.msra.mxu0 0.0
    %125 = vmatprep.subr.mxu0 0.0
    %126 = vmatpush1.msra.mxu0 0.0
    %127 = vmatprep.subr.mxu0 0.0
    %128 = vmatpush1.msra.mxu0 0.0
    %129 = vmatprep.subr.mxu0 0.0
    %130 = vmatpush1.msra.mxu0 0.0
    %131 = vmatprep.mubr.f32.mxu0 0.0
    %132 = vmatmul.mubr.f32.gmra.mrb[0].mxu0 %v65
    %v133 = vpop.f32.mrb[0].mxu0
    %v134 = vadd.f32 0.0, %v133
    %v135 = vpop.f32.mrb[0].mxu0
    %136 = vdwg.mxu0
    %137 = vmatprep.subr.mxu0 0.0
    %138 = vmatpush1.msra.mxu0 %v58
    %139 = vmatprep.subr.mxu0 0.0
    %140 = vmatpush1.msra.mxu0 %v59
    %141 = vmatprep.subr.mxu0 0.0
    %142 = vmatpush1.msra.mxu0 %v60
    %143 = vmatprep.subr.mxu0 0.0
    %144 = vmatpush1.msra.mxu0 %v61
    %145 = vmatprep.subr.mxu0 0.0
    %146 = vmatpush1.msra.mxu0 0.0
    %147 = vmatprep.subr.mxu0 0.0
    %148 = vmatpush1.msra.mxu0 0.0
    %149 = vmatprep.subr.mxu0 0.0
    %150 = vmatpush1.msra.mxu0 0.0
    %151 = vmatprep.subr.mxu0 0.0
    %152 = vmatpush1.msra.mxu0 0.0
    %153 = vmatprep.subr.mxu0 0.0
    %154 = vmatpush1.msra.mxu0 0.0
    %155 = vmatprep.subr.mxu0 0.0
    %156 = vmatpush1.msra.mxu0 0.0
    %157 = vmatprep.subr.mxu0 0.0
    %158 = vmatpush1.msra.mxu0 0.0
    %159 = vmatprep.subr.mxu0 0.0
    %160 = vmatpush1.msra.mxu0 0.0
    %161 = vmatprep.subr.mxu0 0.0
    %162 = vmatpush1.msra.mxu0 0.0
    %163 = vmatprep.subr.mxu0 0.0
    %164 = vmatpush1.msra.mxu0 0.0
    %165 = vmatprep.subr.mxu0 0.0
    %166 = vmatpush1.msra.mxu0 0.0
    %167 = vmatprep.subr.mxu0 0.0
    %168 = vmatpush1.msra.mxu0 0.0
    %169 = vmatprep.subr.mxu0 0.0
    %170 = vmatpush1.msra.mxu0 0.0
    %171 = vmatprep.subr.mxu0 0.0
    %172 = vmatpush1.msra.mxu0 0.0
    %173 = vmatprep.subr.mxu0 0.0
    %174 = vmatpush1.msra.mxu0 0.0
    %175 = vmatprep.subr.mxu0 0.0
    %176 = vmatpush1.msra.mxu0 0.0
    %177 = vmatprep.subr.mxu0 0.0
    %178 = vmatpush1.msra.mxu0 0.0
    %179 = vmatprep.subr.mxu0 0.0
    %180 = vmatpush1.msra.mxu0 0.0
    %181 = vmatprep.subr.mxu0 0.0
    %182 = vmatpush1.msra.mxu0 0.0
    %183 = vmatprep.subr.mxu0 0.0
    %184 = vmatpush1.msra.mxu0 0.0
    %185 = vmatprep.subr.mxu0 0.0
    %186 = vmatpush1.msra.mxu0 0.0
    %187 = vmatprep.subr.mxu0 0.0
    %188 = vmatpush1.msra.mxu0 0.0
    %189 = vmatprep.subr.mxu0 0.0
    %190 = vmatpush1.msra.mxu0 0.0
    %191 = vmatprep.subr.mxu0 0.0
    %192 = vmatpush1.msra.mxu0 0.0
    %193 = vmatprep.subr.mxu0 0.0
    %194 = vmatpush1.msra.mxu0 0.0
    %195 = vmatprep.subr.mxu0 0.0
    %196 = vmatpush1.msra.mxu0 0.0
    %197 = vmatprep.subr.mxu0 0.0
    %198 = vmatpush1.msra.mxu0 0.0
    %199 = vmatprep.subr.mxu0 0.0
    %200 = vmatpush1.msra.mxu0 0.0
    %201 = vmatprep.mubr.f32.mxu0 0.0
    %202 = vmatmul.mubr.f32.gmra.mrb[0].mxu0 %v65
    %v203 = vpop.f32.mrb[0].mxu0
    %v204 = vadd.f32 0.0, %v203
    %v205 = vpop.f32.mrb[0].mxu0
    %206 = vdwg.mxu0
    %vm207 = vcmp.gt.f32.partialorder %v204, 0.0
    %v208 = vmul.f32 %v204, 0.2
    %v209 = vsel %vm207, %v204, %v208
    %210 = vrot.lane.b32.xlu0 %v62, 96
    %v211 = vpop.permute.xlu0 %210
    %v212 = vsel %vm63, %v211, 0
    %214 = vmatprep.subr.mxu0 0.0
    %215 = vmatpush1.msra.mxu0 %v54
    %216 = vmatprep.subr.mxu0 0.0
    %217 = vmatpush1.msra.mxu0 %v55
    %218 = vmatprep.subr.mxu0 0.0
    %219 = vmatpush1.msra.mxu0 %v56
    %220 = vmatprep.subr.mxu0 0.0
    %221 = vmatpush1.msra.mxu0 %v57
    %222 = vmatprep.subr.mxu0 0.0
    %223 = vmatpush1.msra.mxu0 0.0
    %224 = vmatprep.subr.mxu0 0.0
    %225 = vmatpush1.msra.mxu0 0.0
    %226 = vmatprep.subr.mxu0 0.0
    %227 = vmatpush1.msra.mxu0 0.0
    %228 = vmatprep.subr.mxu0 0.0
    %229 = vmatpush1.msra.mxu0 0.0
    %230 = vmatprep.subr.mxu0 0.0
    %231 = vmatpush1.msra.mxu0 0.0
    %232 = vmatprep.subr.mxu0 0.0
    %233 = vmatpush1.msra.mxu0 0.0
    %234 = vmatprep.subr.mxu0 0.0
    %235 = vmatpush1.msra.mxu0 0.0
    %236 = vmatprep.subr.mxu0 0.0
    %237 = vmatpush1.msra.mxu0 0.0
    %238 = vmatprep.subr.mxu0 0.0
    %239 = vmatpush1.msra.mxu0 0.0
    %240 = vmatprep.subr.mxu0 0.0
    %241 = vmatpush1.msra.mxu0 0.0
    %242 = vmatprep.subr.mxu0 0.0
    %243 = vmatpush1.msra.mxu0 0.0
    %244 = vmatprep.subr.mxu0 0.0
    %245 = vmatpush1.msra.mxu0 0.0
    %246 = vmatprep.subr.mxu0 0.0
    %247 = vmatpush1.msra.mxu0 0.0
    %248 = vmatprep.subr.mxu0 0.0
    %249 = vmatpush1.msra.mxu0 0.0
    %250 = vmatprep.subr.mxu0 0.0
    %251 = vmatpush1.msra.mxu0 0.0
    %252 = vmatprep.subr.mxu0 0.0
    %253 = vmatpush1.msra.mxu0 0.0
    %254 = vmatprep.subr.mxu0 0.0
    %255 = vmatpush1.msra.mxu0 0.0
    %256 = vmatprep.subr.mxu0 0.0
    %257 = vmatpush1.msra.mxu0 0.0
    %258 = vmatprep.subr.mxu0 0.0
    %259 = vmatpush1.msra.mxu0 0.0
    %260 = vmatprep.subr.mxu0 0.0
    %261 = vmatpush1.msra.mxu0 0.0
    %262 = vmatprep.subr.mxu0 0.0
    %263 = vmatpush1.msra.mxu0 0.0
    %264 = vmatprep.subr.mxu0 0.0
    %265 = vmatpush1.msra.mxu0 0.0
    %266 = vmatprep.subr.mxu0 0.0
    %267 = vmatpush1.msra.mxu0 0.0
    %268 = vmatprep.subr.mxu0 0.0
    %269 = vmatpush1.msra.mxu0 0.0
    %270 = vmatprep.subr.mxu0 0.0
    %271 = vmatpush1.msra.mxu0 0.0
    %272 = vmatprep.subr.mxu0 0.0
    %273 = vmatpush1.msra.mxu0 0.0
    %274 = vmatprep.subr.mxu0 0.0
    %275 = vmatpush1.msra.mxu0 0.0
    %276 = vmatprep.subr.mxu0 0.0
    %277 = vmatpush1.msra.mxu0 0.0
    %278 = vmatprep.mubr.f32.mxu0 0.0
    %279 = vmatmul.mubr.f32.gmra.mrb[0].mxu0 %v212
    %v280 = vpop.f32.mrb[0].mxu0
    %v281 = vadd.f32 0.0, %v280
    %v282 = vpop.f32.mrb[0].mxu0
    %283 = vdwg.mxu0
    %284 = vmatprep.subr.mxu0 0.0
    %285 = vmatpush1.msra.mxu0 %v58
    %286 = vmatprep.subr.mxu0 0.0
    %287 = vmatpush1.msra.mxu0 %v59
    %288 = vmatprep.subr.mxu0 0.0
    %289 = vmatpush1.msra.mxu0 %v60
    %290 = vmatprep.subr.mxu0 0.0
    %291 = vmatpush1.msra.mxu0 %v61
    %292 = vmatprep.subr.mxu0 0.0
    %293 = vmatpush1.msra.mxu0 0.0
    %294 = vmatprep.subr.mxu0 0.0
    %295 = vmatpush1.msra.mxu0 0.0
    %296 = vmatprep.subr.mxu0 0.0
    %297 = vmatpush1.msra.mxu0 0.0
    %298 = vmatprep.subr.mxu0 0.0
    %299 = vmatpush1.msra.mxu0 0.0
    %300 = vmatprep.subr.mxu0 0.0
    %301 = vmatpush1.msra.mxu0 0.0
    %302 = vmatprep.subr.mxu0 0.0
    %303 = vmatpush1.msra.mxu0 0.0
    %304 = vmatprep.subr.mxu0 0.0
    %305 = vmatpush1.msra.mxu0 0.0
    %306 = vmatprep.subr.mxu0 0.0
    %307 = vmatpush1.msra.mxu0 0.0
    %308 = vmatprep.subr.mxu0 0.0
    %309 = vmatpush1.msra.mxu0 0.0
    %310 = vmatprep.subr.mxu0 0.0
    %311 = vmatpush1.msra.mxu0 0.0
    %312 = vmatprep.subr.mxu0 0.0
    %313 = vmatpush1.msra.mxu0 0.0
    %314 = vmatprep.subr.mxu0 0.0
    %315 = vmatpush1.msra.mxu0 0.0
    %316 = vmatprep.subr.mxu0 0.0
    %317 = vmatpush1.msra.mxu0 0.0
    %318 = vmatprep.subr.mxu0 0.0
    %319 = vmatpush1.msra.mxu0 0.0
    %320 = vmatprep.subr.mxu0 0.0
    %321 = vmatpush1.msra.mxu0 0.0
    %322 = vmatprep.subr.mxu0 0.0
    %323 = vmatpush1.msra.mxu0 0.0
    %324 = vmatprep.subr.mxu0 0.0
    %325 = vmatpush1.msra.mxu0 0.0
    %326 = vmatprep.subr.mxu0 0.0
    %327 = vmatpush1.msra.mxu0 0.0
    %328 = vmatprep.subr.mxu0 0.0
    %329 = vmatpush1.msra.mxu0 0.0
    %330 = vmatprep.subr.mxu0 0.0
    %331 = vmatpush1.msra.mxu0 0.0
    %332 = vmatprep.subr.mxu0 0.0
    %333 = vmatpush1.msra.mxu0 0.0
    %334 = vmatprep.subr.mxu0 0.0
    %335 = vmatpush1.msra.mxu0 0.0
    %336 = vmatprep.subr.mxu0 0.0
    %337 = vmatpush1.msra.mxu0 0.0
    %338 = vmatprep.subr.mxu0 0.0
    %339 = vmatpush1.msra.mxu0 0.0
    %340 = vmatprep.subr.mxu0 0.0
    %341 = vmatpush1.msra.mxu0 0.0
    %342 = vmatprep.subr.mxu0 0.0
    %343 = vmatpush1.msra.mxu0 0.0
    %344 = vmatprep.subr.mxu0 0.0
    %345 = vmatpush1.msra.mxu0 0.0
    %346 = vmatprep.subr.mxu0 0.0
    %347 = vmatpush1.msra.mxu0 0.0
    %348 = vmatprep.mubr.f32.mxu0 0.0
    %349 = vmatmul.mubr.f32.gmra.mrb[0].mxu0 %v212
    %v350 = vpop.f32.mrb[0].mxu0
    %v351 = vadd.f32 0.0, %v350
    %v352 = vpop.f32.mrb[0].mxu0
    %353 = vdwg.mxu0
    %vm354 = vcmp.gt.f32.partialorder %v351, 0.0
    %v355 = vmul.f32 %v351, 0.2
    %v356 = vsel %vm354, %v351, %v355
    %v357 = vmax.f32 %v209, %v356
    %v358 = vsub.f32 %v209, %v357
    %v359 = vmul.f32 %v358, 1.442695
    %v360 = vpow.pop %v359
    %v361 = vmul.f32 %v360, %v134
    %v362 = vadd.f32 %v361, 0.0
    %v363 = vadd.f32 %v360, 0.0
    %v364 = vsub.f32 %v356, %v357
    %v365 = vmul.f32 %v364, 1.442695
    %v366 = vpow.pop %v365
    %v367 = vmul.f32 %v366, %v281
    %v368 = vadd.f32 %v362, %v367
    %v369 = vadd.f32 %v363, %v366
    %v370 = vrcp.pop %v369
    %v371 = vmul.f32 %v369, %v370
    %v372 = vsub.f32 2.0, %v371
    %v373 = vmul.f32 %v370, %v372
    %v374 = vmul.f32 %v368, %v373
    %vm375 = vcmask 254976
    %376 = vst.msk [vmem:[#allocation8] sm:$0x3] %vm375, %v374
    // Predicated region
    $region26: #{tpu_custom_call.1} parent=1 // pred_check
      _
    $region27: #{tpu_custom_call.1} parent=1 // pred_check_branch
      %378 = sbr.rel (0) target = $region29
    $region28: #{tpu_custom_call.1} parent=1 // pred_region
      %s380 = ssub.s32 32, 32
      %381 = vsyncadd [#allocation4], %s380
      %s383 = sshll.u32 [#allocation8], 4
      %s384 = int_to_ptr.vmem [resolvable:$true] %s383
      %386 = dma.vmem_to_hbm [thread:$0]  %s384, 32, %s3, [#allocation4]
    $region29: #{tpu_custom_call.1} parent=1 // pred_fallthru
      _
    // Predicated region
    $region30: #{tpu_custom_call.1} parent=1 // pred_check
      _
    $region31: #{tpu_custom_call.1} parent=1 // pred_check_branch
      %388 = sbr.rel (0) target = $region33
    $region32: #{tpu_custom_call.1} parent=1 // pred_region
      %389 = dma.done [#allocation4], 32
    $region33: #{tpu_custom_call.1} parent=1 // pred_fallthru
      _
    %390 = vsyncpa [#allocation3], 1
    %391 = vsyncpa [#allocation6], 1
    %392 = vsyncpa [#allocation4], 1

</llo_original>
